<compile_context>
chip_gen: v7x
topology: tpu7x:2x2x1
jax: 0.10.0
libtpu: 0.0.40
codegen_flags: <defaults>
</compile_context>

<pallas_src>
import jax
import jax.numpy as jnp
import numpy as np
from jax.experimental import pallas as pl
from jax.experimental.pallas import tpu as pltpu


OMEGA_0 = 1.0              # all blocks in Position_Net use omega_0 = 1.0
H1, H2, H3 = 64, 128, 256  # hidden widths


def _round_up(x, m):
    return (x + m - 1) // m * m


# --------------------------------------------------------------------------
# Kernel
# --------------------------------------------------------------------------
def position_net_kernel(
    x_ref,                  # (TB, 1)
    w1_ref, b1_ref,         # (1, 64)  block-1 main
    ws1_ref, bs1_ref,       # (1, 64)  block-1 shortcut
    w2f_ref, b2f_ref,       # (64, 256), (1, 256)   = [w2 | ws2], [b2 | bs2]
    w3f_ref, b3f_ref,       # (128,512), (1, 512)   = [w3 | ws3], [b3 | bs3]
    w4p_ref, b4p_ref,       # (256, OUT_PAD), (1, OUT_PAD)  (zero-padded)
    out_ref,                # (TB, OUT_PAD)
):
    x = x_ref[...].astype(jnp.float32)                       # (TB, 1)

    # ---- Block 1 (in_dim = 1): two lane-dense broadcast FMAs, kept unfused
    # so main and shortcut both sit at lane offset 0 of their own vregs
    # (no 64-lane rotate needed to align them for the add). ----
    lin1 = x * w1_ref[...] + b1_ref[...]                      # (TB, 64)
    sc1 = x * ws1_ref[...] + bs1_ref[...]                     # (TB, 64)
    h = jnp.maximum(jnp.sin(lin1) + sc1, 0.0)                 # (TB, 64)

    # ---- Block 2: single fused MXU matmul 64 -> 256; split at lane 128
    # (vreg-aligned). ----
    f2 = jnp.dot(h, w2f_ref[...], preferred_element_type=jnp.float32) + b2f_ref[...]
    h = jnp.maximum(jnp.sin(f2[:, :H2]) + f2[:, H2:], 0.0)    # (TB, 128)

    # ---- Block 3: single fused MXU matmul 128 -> 512; split at lane 256
    # (vreg-aligned). ----
    f3 = jnp.dot(h, w3f_ref[...], preferred_element_type=jnp.float32) + b3f_ref[...]
    h = jnp.maximum(jnp.sin(f3[:, :H3]) + f3[:, H3:], 0.0)    # (TB, 256)

    # ---- Final linear: 256 -> OUT_PAD (lane-dense, unmasked stores) ----
    out = jnp.dot(h, w4p_ref[...], preferred_element_type=jnp.float32) + b4p_ref[...]
    out_ref[...] = out.astype(out_ref.dtype)


# --------------------------------------------------------------------------
# Wrapper helpers
# --------------------------------------------------------------------------
def _pack_params(params, out_pad):
    """Concatenate main/shortcut weights (blocks 2/3) and pad the output layer."""
    packed = {
        "w1": params["w1"], "b1": params["b1"],
        "ws1": params["ws1"], "bs1": params["bs1"],
        "w2f": jnp.concatenate([params["w2"], params["ws2"]], axis=1),
        "b2f": jnp.concatenate([params["b2"], params["bs2"]], axis=1),
        "w3f": jnp.concatenate([params["w3"], params["ws3"]], axis=1),
        "b3f": jnp.concatenate([params["b3"], params["bs3"]], axis=1),
    }
    out_dim = params["w4"].shape[1]
    pad = out_pad - out_dim
    if pad:
        packed["w4p"] = jnp.pad(params["w4"], ((0, 0), (0, pad)))
        packed["b4p"] = jnp.pad(params["b4"], ((0, 0), (0, pad)))
    else:
        packed["w4p"] = params["w4"]
        packed["b4p"] = params["b4"]
    return packed


def _choose_batch_tile(B, block_b):
    """Pick a batch tile: multiple of 8, <= block_b.
    Preferences: (a) tile divides the 8-aligned batch (no batch padding /
    no epilogue slice), (b) grid has >= 2 steps when the batch allows it so
    the 'parallel' batch axis can feed both TensorCores on v7x."""
    B8 = _round_up(max(B, 1), 8)
    if B8 <= 8:
        return 8, B8
    half = (B8 // 2) // 8 * 8          # largest sublane-multiple <= B8/2
    cap = min(block_b, half if half >= 8 else B8)
    cap = max(cap, 8)
    for tb in range(cap, 7, -8):       # largest exact divisor -> no padding
        if B8 % tb == 0:
            return tb, B8
    return cap, _round_up(B8, cap)


def _vmem_limit_bytes(tb, out_pad, weight_bytes):
    """Scoped-VMEM limit sized to the tile (floor 32 MiB, cap 64 MiB for v7x)."""
    io = 2 * (tb * 4 + tb * out_pad * 4)                       # double-buffered I/O
    act = tb * 4 * (3 * 64 + 256 + 128 + 512 + 256 + out_pad)  # f32 temporaries bound
    need = io + act + 2 * weight_bytes
    return int(min(64 << 20, max(32 << 20, 2 * need)))


# --------------------------------------------------------------------------
# Wrapper
# --------------------------------------------------------------------------
def position_net_forward(x, params, *, block_b=1024):
    """x: (B, 1) f32  ->  (B, num_vorts*2) f32."""
    B = x.shape[0]
    out_dim = params["w4"].shape[1]
    out_pad = _round_up(out_dim, 128)          # lane-dense output width

    packed = _pack_params(params, out_pad)

    tb, B_pad = _choose_batch_tile(B, block_b)
    if B_pad != B:
        x = jnp.pad(x, ((0, B_pad - B), (0, 0)))

    grid = (B_pad // tb,)

    batch_map = lambda i: (i, 0)       # x / out tiles march over batch
    resident = lambda i: (0, 0)        # weights stay VMEM-resident across steps

    weight_names = ("w1", "b1", "ws1", "bs1",
                    "w2f", "b2f", "w3f", "b3f", "w4p", "b4p")
    weight_specs = [pl.BlockSpec(packed[n].shape, resident) for n in weight_names]
    weight_bytes = sum(int(np.prod(packed[n].shape)) * 4 for n in weight_names)

    out_full = pl.pallas_call(
        position_net_kernel,
        out_shape=jax.ShapeDtypeStruct((B_pad, out_pad), jnp.float32),
        grid_spec=pltpu.PrefetchScalarGridSpec(
            num_scalar_prefetch=0,
            grid=grid,
            in_specs=[pl.BlockSpec((tb, 1), batch_map)] + weight_specs,
            out_specs=pl.BlockSpec((tb, out_pad), batch_map),
        ),
        compiler_params=pltpu.CompilerParams(
            dimension_semantics=("parallel",),   # shard batch over TCs (v7x)
            vmem_limit_bytes=_vmem_limit_bytes(tb, out_pad, weight_bytes),
        ),
    )(x, *(packed[n] for n in weight_names))

    # Avoid the epilogue slice (an extra HBM pass) whenever nothing was padded.
    if B_pad == B and out_pad == out_dim:
        return out_full
    return out_full[:B, :out_dim]


# --------------------------------------------------------------------------
# Parameter init (mirrors PyTorch module init ranges) + pure-JAX reference
# --------------------------------------------------------------------------
def _uniform(key, shape, lo, hi):
    return jax.random.uniform(key, shape, dtype=jnp.float32, minval=lo, maxval=hi)


def init_params(key, num_vorts):
    """Weights stored as (in_features, out_features); biases as (1, out)."""
    dims = [(1, H1), (H1, H2), (H2, H3)]
    out_dim = num_vorts * 2
    keys = jax.random.split(key, 16)
    ki = iter(range(16))
    params = {}

    for idx, (fin, fout) in enumerate(dims, start=1):
        if idx == 1:  # is_first=True
            w_bound = 1.0 / fin
        else:
            w_bound = float(np.sqrt(6.0 / fin)) / OMEGA_0
        lin_bound = 1.0 / float(np.sqrt(fin))
        params[f"w{idx}"] = _uniform(keys[next(ki)], (fin, fout), -w_bound, w_bound)
        params[f"b{idx}"] = _uniform(keys[next(ki)], (1, fout), -lin_bound, lin_bound)
        params[f"ws{idx}"] = _uniform(keys[next(ki)], (fin, fout), -lin_bound, lin_bound)
        params[f"bs{idx}"] = _uniform(keys[next(ki)], (1, fout), -lin_bound, lin_bound)

    fin = H3
    lin_bound = 1.0 / float(np.sqrt(fin))
    params["w4"] = _uniform(keys[next(ki)], (fin, out_dim), -lin_bound, lin_bound)
    params["b4"] = _uniform(keys[next(ki)], (1, out_dim), -lin_bound, lin_bound)
    return params


def reference_forward(x, params):
    """Pure-JAX reference matching the PyTorch forward."""
    h = x
    for idx in (1, 2, 3):
        lin = h @ params[f"w{idx}"] + params[f"b{idx}"]
        sc = h @ params[f"ws{idx}"] + params[f"bs{idx}"]
        h = jnp.maximum(jnp.sin(OMEGA_0 * lin) + sc, 0.0)
    return h @ params["w4"] + params["b4"]


# --------------------------------------------------------------------------
if __name__ == "__main__":
    key = jax.random.PRNGKey(0)
    k_param, k_x, k_param2, k_x2 = jax.random.split(key, 4)

    # Case 1: small, out_dim (32) needs lane padding -> epilogue slice path.
    num_vorts = 16          # out_dim = 32
    batch = 8
    params = init_params(k_param, num_vorts)
    x = jax.random.uniform(k_x, (batch, 1), dtype=jnp.float32)

    out = jax.block_until_ready(position_net_forward(x, params))
    ref = reference_forward(x, params)
    np.testing.assert_allclose(np.asarray(out), np.asarray(ref), rtol=1e-5, atol=1e-5)
    assert out.shape == (batch, num_vorts * 2)

    # Case 2: out_dim % 128 == 0 and tile divides batch -> direct (no-slice)
    # return path and a multi-step parallel grid.
    num_vorts2 = 64         # out_dim = 128 (lane dense)
    batch2 = 40
    params2 = init_params(k_param2, num_vorts2)
    x2 = jax.random.uniform(k_x2, (batch2, 1), dtype=jnp.float32)

    out2 = jax.block_until_ready(position_net_forward(x2, params2))
    ref2 = reference_forward(x2, params2)
    np.testing.assert_allclose(np.asarray(out2), np.asarray(ref2), rtol=1e-5, atol=1e-5)
    assert out2.shape == (batch2, num_vorts2 * 2)

    print("KERNEL_OK")
</pallas_src>

<mosaic_0001>
module attributes {stable_mosaic.version = 11 : i64} {
  func.func @position_net_kernel(%arg0: i32, %arg1: memref<8x1xf32, #tpu.memory_space<vmem>>, %arg2: memref<1x64xf32, #tpu.memory_space<vmem>>, %arg3: memref<1x64xf32, #tpu.memory_space<vmem>>, %arg4: memref<1x64xf32, #tpu.memory_space<vmem>>, %arg5: memref<1x64xf32, #tpu.memory_space<vmem>>, %arg6: memref<64x256xf32, #tpu.memory_space<vmem>>, %arg7: memref<1x256xf32, #tpu.memory_space<vmem>>, %arg8: memref<128x512xf32, #tpu.memory_space<vmem>>, %arg9: memref<1x512xf32, #tpu.memory_space<vmem>>, %arg10: memref<256x128xf32, #tpu.memory_space<vmem>>, %arg11: memref<1x128xf32, #tpu.memory_space<vmem>>, %arg12: memref<8x128xf32, #tpu.memory_space<vmem>>) attributes {dimension_semantics = [#tpu.dimension_semantics<parallel>], iteration_bounds = array<i64: 1>, scalar_prefetch = 0 : i64, scratch_operands = 0 : i64, tpu.core_type = #tpu.core_type<tc>, window_params = [{transform_indices = @transform_0, window_bounds = array<i64: 8, 1>}, {pipeline_mode = #tpu.pipeline_mode<synchronous>, transform_indices = @transform_1, window_bounds = array<i64: 1, 64>}, {pipeline_mode = #tpu.pipeline_mode<synchronous>, transform_indices = @transform_2, window_bounds = array<i64: 1, 64>}, {pipeline_mode = #tpu.pipeline_mode<synchronous>, transform_indices = @transform_3, window_bounds = array<i64: 1, 64>}, {pipeline_mode = #tpu.pipeline_mode<synchronous>, transform_indices = @transform_4, window_bounds = array<i64: 1, 64>}, {pipeline_mode = #tpu.pipeline_mode<synchronous>, transform_indices = @transform_5, window_bounds = array<i64: 64, 256>}, {pipeline_mode = #tpu.pipeline_mode<synchronous>, transform_indices = @transform_6, window_bounds = array<i64: 1, 256>}, {pipeline_mode = #tpu.pipeline_mode<synchronous>, transform_indices = @transform_7, window_bounds = array<i64: 128, 512>}, {pipeline_mode = #tpu.pipeline_mode<synchronous>, transform_indices = @transform_8, window_bounds = array<i64: 1, 512>}, {pipeline_mode = #tpu.pipeline_mode<synchronous>, transform_indices = @transform_9, window_bounds = array<i64: 256, 128>}, {pipeline_mode = #tpu.pipeline_mode<synchronous>, transform_indices = @transform_10, window_bounds = array<i64: 1, 128>}, {transform_indices = @transform_11, window_bounds = array<i64: 8, 128>}]} {
    %c0 = arith.constant 0 : index
    %c0_0 = arith.constant 0 : index
    %0 = vector.load %arg1[%c0, %c0_0] : memref<8x1xf32, #tpu.memory_space<vmem>>, vector<8x1xf32>
    %c0_1 = arith.constant 0 : index
    %c0_2 = arith.constant 0 : index
    %1 = vector.load %arg2[%c0_1, %c0_2] : memref<1x64xf32, #tpu.memory_space<vmem>>, vector<1x64xf32>
    %2 = vector.broadcast %0 : vector<8x1xf32> to vector<8x64xf32>
    %3 = vector.broadcast %1 : vector<1x64xf32> to vector<8x64xf32>
    %4 = arith.mulf %2, %3 : vector<8x64xf32>
    %c0_3 = arith.constant 0 : index
    %c0_4 = arith.constant 0 : index
    %5 = vector.load %arg3[%c0_3, %c0_4] : memref<1x64xf32, #tpu.memory_space<vmem>>, vector<1x64xf32>
    %6 = vector.broadcast %5 : vector<1x64xf32> to vector<8x64xf32>
    %7 = arith.addf %4, %6 : vector<8x64xf32>
    %c0_5 = arith.constant 0 : index
    %c0_6 = arith.constant 0 : index
    %8 = vector.load %arg4[%c0_5, %c0_6] : memref<1x64xf32, #tpu.memory_space<vmem>>, vector<1x64xf32>
    %9 = vector.broadcast %0 : vector<8x1xf32> to vector<8x64xf32>
    %10 = vector.broadcast %8 : vector<1x64xf32> to vector<8x64xf32>
    %11 = arith.mulf %9, %10 : vector<8x64xf32>
    %c0_7 = arith.constant 0 : index
    %c0_8 = arith.constant 0 : index
    %12 = vector.load %arg5[%c0_7, %c0_8] : memref<1x64xf32, #tpu.memory_space<vmem>>, vector<1x64xf32>
    %13 = vector.broadcast %12 : vector<1x64xf32> to vector<8x64xf32>
    %14 = arith.addf %11, %13 : vector<8x64xf32>
    %15 = math.sin %7 : vector<8x64xf32>
    %16 = arith.addf %15, %14 : vector<8x64xf32>
    %cst = arith.constant 0.000000e+00 : f32
    %17 = vector.broadcast %cst : f32 to vector<8x64xf32>
    %18 = arith.maximumf %16, %17 : vector<8x64xf32>
    %c0_9 = arith.constant 0 : index
    %c0_10 = arith.constant 0 : index
    %19 = vector.load %arg6[%c0_9, %c0_10] : memref<64x256xf32, #tpu.memory_space<vmem>>, vector<64x256xf32>
    %cst_11 = arith.constant dense<0.000000e+00> : vector<8x256xf32>
    %20 = tpu.matmul %18, %19, %cst_11 {dimension_numbers = #tpu.dot_dimension_numbers<[1], [0], [0], [1], [0, 0, 1, 1], [], []>} : vector<8x64xf32>, vector<64x256xf32>, vector<8x256xf32> -> vector<8x256xf32>
    %c0_12 = arith.constant 0 : index
    %c0_13 = arith.constant 0 : index
    %21 = vector.load %arg7[%c0_12, %c0_13] : memref<1x256xf32, #tpu.memory_space<vmem>>, vector<1x256xf32>
    %22 = vector.broadcast %21 : vector<1x256xf32> to vector<8x256xf32>
    %23 = arith.addf %20, %22 : vector<8x256xf32>
    %24 = vector.extract_strided_slice %23 {offsets = [0, 0], sizes = [8, 128], strides = [1, 1]} : vector<8x256xf32> to vector<8x128xf32>
    %25 = math.sin %24 : vector<8x128xf32>
    %26 = vector.extract_strided_slice %23 {offsets = [0, 128], sizes = [8, 128], strides = [1, 1]} : vector<8x256xf32> to vector<8x128xf32>
    %27 = arith.addf %25, %26 : vector<8x128xf32>
    %cst_14 = arith.constant 0.000000e+00 : f32
    %28 = vector.broadcast %cst_14 : f32 to vector<8x128xf32>
    %29 = arith.maximumf %27, %28 : vector<8x128xf32>
    %c0_15 = arith.constant 0 : index
    %c0_16 = arith.constant 0 : index
    %30 = vector.load %arg8[%c0_15, %c0_16] : memref<128x512xf32, #tpu.memory_space<vmem>>, vector<128x512xf32>
    %cst_17 = arith.constant dense<0.000000e+00> : vector<8x512xf32>
    %31 = tpu.matmul %29, %30, %cst_17 {dimension_numbers = #tpu.dot_dimension_numbers<[1], [0], [0], [1], [0, 0, 1, 1], [], []>} : vector<8x128xf32>, vector<128x512xf32>, vector<8x512xf32> -> vector<8x512xf32>
    %c0_18 = arith.constant 0 : index
    %c0_19 = arith.constant 0 : index
    %32 = vector.load %arg9[%c0_18, %c0_19] : memref<1x512xf32, #tpu.memory_space<vmem>>, vector<1x512xf32>
    %33 = vector.broadcast %32 : vector<1x512xf32> to vector<8x512xf32>
    %34 = arith.addf %31, %33 : vector<8x512xf32>
    %35 = vector.extract_strided_slice %34 {offsets = [0, 0], sizes = [8, 256], strides = [1, 1]} : vector<8x512xf32> to vector<8x256xf32>
    %36 = math.sin %35 : vector<8x256xf32>
    %37 = vector.extract_strided_slice %34 {offsets = [0, 256], sizes = [8, 256], strides = [1, 1]} : vector<8x512xf32> to vector<8x256xf32>
    %38 = arith.addf %36, %37 : vector<8x256xf32>
    %cst_20 = arith.constant 0.000000e+00 : f32
    %39 = vector.broadcast %cst_20 : f32 to vector<8x256xf32>
    %40 = arith.maximumf %38, %39 : vector<8x256xf32>
    %c0_21 = arith.constant 0 : index
    %c0_22 = arith.constant 0 : index
    %41 = vector.load %arg10[%c0_21, %c0_22] : memref<256x128xf32, #tpu.memory_space<vmem>>, vector<256x128xf32>
    %cst_23 = arith.constant dense<0.000000e+00> : vector<8x128xf32>
    %42 = tpu.matmul %40, %41, %cst_23 {dimension_numbers = #tpu.dot_dimension_numbers<[1], [0], [0], [1], [0, 0, 1, 1], [], []>} : vector<8x256xf32>, vector<256x128xf32>, vector<8x128xf32> -> vector<8x128xf32>
    %c0_24 = arith.constant 0 : index
    %c0_25 = arith.constant 0 : index
    %43 = vector.load %arg11[%c0_24, %c0_25] : memref<1x128xf32, #tpu.memory_space<vmem>>, vector<1x128xf32>
    %44 = vector.broadcast %43 : vector<1x128xf32> to vector<8x128xf32>
    %45 = arith.addf %42, %44 : vector<8x128xf32>
    %c0_26 = arith.constant 0 : index
    %c0_27 = arith.constant 0 : index
    %46 = vector.load %arg12[%c0_26, %c0_27] : memref<8x128xf32, #tpu.memory_space<vmem>>, vector<8x128xf32>
    tpu.vector_store %arg12[%c0_26, %c0_27], %45 {strides = array<i32>} : memref<8x128xf32, #tpu.memory_space<vmem>>, vector<8x128xf32>,
    return
  }
  func.func @transform_0(%arg0: i32) -> (i32, i32) {
    %c0_i32 = arith.constant 0 : i32
    %c0_i32_0 = arith.constant 0 : i32
    return %arg0, %c0_i32 : i32, i32
  }
  func.func @transform_1(%arg0: i32) -> (i32, i32) {
    %c0_i32 = arith.constant 0 : i32
    %c0_i32_0 = arith.constant 0 : i32
    %c0_i32_1 = arith.constant 0 : i32
    return %c0_i32, %c0_i32_0 : i32, i32
  }
  func.func @transform_2(%arg0: i32) -> (i32, i32) {
    %c0_i32 = arith.constant 0 : i32
    %c0_i32_0 = arith.constant 0 : i32
    %c0_i32_1 = arith.constant 0 : i32
    return %c0_i32, %c0_i32_0 : i32, i32
  }
  func.func @transform_3(%arg0: i32) -> (i32, i32) {
    %c0_i32 = arith.constant 0 : i32
    %c0_i32_0 = arith.constant 0 : i32
    %c0_i32_1 = arith.constant 0 : i32
    return %c0_i32, %c0_i32_0 : i32, i32
  }
  func.func @transform_4(%arg0: i32) -> (i32, i32) {
    %c0_i32 = arith.constant 0 : i32
    %c0_i32_0 = arith.constant 0 : i32
    %c0_i32_1 = arith.constant 0 : i32
    return %c0_i32, %c0_i32_0 : i32, i32
  }
  func.func @transform_5(%arg0: i32) -> (i32, i32) {
    %c0_i32 = arith.constant 0 : i32
    %c0_i32_0 = arith.constant 0 : i32
    %c0_i32_1 = arith.constant 0 : i32
    return %c0_i32, %c0_i32_0 : i32, i32
  }
  func.func @transform_6(%arg0: i32) -> (i32, i32) {
    %c0_i32 = arith.constant 0 : i32
    %c0_i32_0 = arith.constant 0 : i32
    %c0_i32_1 = arith.constant 0 : i32
    return %c0_i32, %c0_i32_0 : i32, i32
  }
  func.func @transform_7(%arg0: i32) -> (i32, i32) {
    %c0_i32 = arith.constant 0 : i32
    %c0_i32_0 = arith.constant 0 : i32
    %c0_i32_1 = arith.constant 0 : i32
    return %c0_i32, %c0_i32_0 : i32, i32
  }
  func.func @transform_8(%arg0: i32) -> (i32, i32) {
    %c0_i32 = arith.constant 0 : i32
    %c0_i32_0 = arith.constant 0 : i32
    %c0_i32_1 = arith.constant 0 : i32
    return %c0_i32, %c0_i32_0 : i32, i32
  }
  func.func @transform_9(%arg0: i32) -> (i32, i32) {
    %c0_i32 = arith.constant 0 : i32
    %c0_i32_0 = arith.constant 0 : i32
    %c0_i32_1 = arith.constant 0 : i32
    return %c0_i32, %c0_i32_0 : i32, i32
  }
  func.func @transform_10(%arg0: i32) -> (i32, i32) {
    %c0_i32 = arith.constant 0 : i32
    %c0_i32_0 = arith.constant 0 : i32
    %c0_i32_1 = arith.constant 0 : i32
    return %c0_i32, %c0_i32_0 : i32, i32
  }
  func.func @transform_11(%arg0: i32) -> (i32, i32) {
    %c0_i32 = arith.constant 0 : i32
    %c0_i32_0 = arith.constant 0 : i32
    return %arg0, %c0_i32 : i32, i32
  }
}

</mosaic_0001>

<llo_original>
// kernel: tpu_custom_call.1
$region0: #{tpu_custom_call.1}
  #allocation0 [shape = 'u32[]', space=smem, size = 0x4, offset = 0x4, fixed_abs, tag = 'smem constant byte address 0x4 - core index']
  #allocation1 [shape = 'u32[144,128]{1,0:T(1,128)}', space=vmem, size = 0x12000, scoped, tag = 'internal scratch']
  %s0 = inlined_call_operand.vmem [shape: f32[8,1], index: 0, kind: input, shape index: {}]
  %s1 = inlined_call_operand.vmem [shape: f32[1,64], index: 1, kind: input, shape index: {}]
  %s2 = inlined_call_operand.vmem [shape: f32[1,64], index: 2, kind: input, shape index: {}]
  %s3 = inlined_call_operand.vmem [shape: f32[1,64], index: 3, kind: input, shape index: {}]
  %s4 = inlined_call_operand.vmem [shape: f32[1,64], index: 4, kind: input, shape index: {}]
  %s5 = inlined_call_operand.hbm [shape: f32[64,256], index: 5, kind: input, shape index: {}]
  %s6 = inlined_call_operand.vmem [shape: f32[1,256], index: 6, kind: input, shape index: {}]
  %s7 = inlined_call_operand.hbm [shape: f32[128,512], index: 7, kind: input, shape index: {}]
  %s8 = inlined_call_operand.vmem [shape: f32[1,512], index: 8, kind: input, shape index: {}]
  %s9 = inlined_call_operand.hbm [shape: f32[256,128], index: 9, kind: input, shape index: {}]
  %s10 = inlined_call_operand.vmem [shape: f32[1,128], index: 10, kind: input, shape index: {}]
  %s11 = inlined_call_operand.hbm [shape: f32[8,128], index: 11, kind: output, shape index: {}]
  %s12 = sld [smem:[#allocation0]]
  $region66: #{tpu_custom_call.1} parent=0
    _
  %s14 = ssub.s32 1, %s12
  %s15 = scalar_select 0, %s14, %s12
  $region1: #{tpu_custom_call.1} parent=0
    #allocation2 [shape = 'u8[65536]{0}', space=vmem, size = 0x10000, scoped, tag = 'input window, operand 5, single buffered']
    #allocation3 [shape = 's32[1]{0}', space=sflag, size = 0x4, scoped, tag = 'scoped memory for tpu_custom_call.1']
    #allocation4 [shape = 's32[1]{0}', space=sflag, size = 0x4, scoped, tag = 'scoped memory for tpu_custom_call.1']
    #allocation5 [shape = 'u8[262144]{0}', space=vmem, size = 0x40000, scoped, tag = 'input window, operand 7, single buffered']
    #allocation6 [shape = 's32[1]{0}', space=sflag, size = 0x4, scoped, tag = 'scoped memory for tpu_custom_call.1']
    #allocation7 [shape = 'u8[131072]{0}', space=vmem, size = 0x20000, scoped, tag = 'input window, operand 9, single buffered']
    #allocation8 [shape = 'u8[4096]{0}', space=vmem, size = 0x1000, scoped, tag = 'output window, operand 0, single buffered']
    %16 = vsyncpa [#allocation3], 0
    %17 = vsyncpa [#allocation6], 0
    %18 = vsyncpa [#allocation4], 0
    // Predicated region
    $region2: #{tpu_custom_call.1} parent=1 // pred_check
      _
    $region3: #{tpu_custom_call.1} parent=1 // pred_check_branch
      %20 = sbr.rel (0) target = $region5
    $region4: #{tpu_custom_call.1} parent=1 // pred_region
      _
    $region5: #{tpu_custom_call.1} parent=1 // pred_fallthru
      _
    // Predicated region
    $region6: #{tpu_custom_call.1} parent=1 // pred_check
      _
    $region7: #{tpu_custom_call.1} parent=1 // pred_check_branch
      %22 = sbr.rel (0) target = $region9
    $region8: #{tpu_custom_call.1} parent=1 // pred_region
      _
    $region9: #{tpu_custom_call.1} parent=1 // pred_fallthru
      _
    // Predicated region
    $region10: #{tpu_custom_call.1} parent=1 // pred_check
      _
    $region11: #{tpu_custom_call.1} parent=1 // pred_check_branch
      %24 = sbr.rel (0) target = $region13
    $region12: #{tpu_custom_call.1} parent=1 // pred_region
      _
    $region13: #{tpu_custom_call.1} parent=1 // pred_fallthru
      _
    // Predicated region
    $region14: #{tpu_custom_call.1} parent=1 // pred_check
      _
    $region15: #{tpu_custom_call.1} parent=1 // pred_check_branch
      %26 = sbr.rel (0) target = $region17
    $region16: #{tpu_custom_call.1} parent=1 // pred_region
      _
    $region17: #{tpu_custom_call.1} parent=1 // pred_fallthru
      _
    // Predicated region
    $region18: #{tpu_custom_call.1} parent=1 // pred_check
      _
    $region19: #{tpu_custom_call.1} parent=1 // pred_check_branch
      %28 = sbr.rel (0) target = $region21
    $region20: #{tpu_custom_call.1} parent=1 // pred_region
      _
    $region21: #{tpu_custom_call.1} parent=1 // pred_fallthru
      _
    // Predicated region
    $region22: #{tpu_custom_call.1} parent=1 // pred_check
      _
    $region23: #{tpu_custom_call.1} parent=1 // pred_check_branch
      %30 = sbr.rel (0) target = $region25
    $region24: #{tpu_custom_call.1} parent=1 // pred_region
      %s32 = ssub.s32 2048, 2048
      %33 = vsyncadd [#allocation3], %s32
      %s34 = sshll.u32 [#allocation2], 4
      %s35 = int_to_ptr.vmem [resolvable:$true] %s34
      %40 = dma.hbm_to_vmem [thread:$0]  %s5, 2048, %s35, [#allocation3], 256, 256, 16
    $region25: #{tpu_custom_call.1} parent=1 // pred_fallthru
      _
    // Predicated region
    $region26: #{tpu_custom_call.1} parent=1 // pred_check
      _
    $region27: #{tpu_custom_call.1} parent=1 // pred_check_branch
      %42 = sbr.rel (0) target = $region29
    $region28: #{tpu_custom_call.1} parent=1 // pred_region
      _
    $region29: #{tpu_custom_call.1} parent=1 // pred_fallthru
      _
    // Predicated region
    $region30: #{tpu_custom_call.1} parent=1 // pred_check
      _
    $region31: #{tpu_custom_call.1} parent=1 // pred_check_branch
      %44 = sbr.rel (0) target = $region33
    $region32: #{tpu_custom_call.1} parent=1 // pred_region
      %s46 = ssub.s32 8192, 8192
      %47 = vsyncadd [#allocation6], %s46
      %s48 = sshll.u32 [#allocation5], 4
      %s49 = int_to_ptr.vmem [resolvable:$true] %s48
      %54 = dma.hbm_to_vmem [thread:$0]  %s7, 8192, %s49, [#allocation6], 512, 512, 32
    $region33: #{tpu_custom_call.1} parent=1 // pred_fallthru
      _
    // Predicated region
    $region34: #{tpu_custom_call.1} parent=1 // pred_check
      _
    $region35: #{tpu_custom_call.1} parent=1 // pred_check_branch
      %56 = sbr.rel (0) target = $region37
    $region36: #{tpu_custom_call.1} parent=1 // pred_region
      _
    $region37: #{tpu_custom_call.1} parent=1 // pred_fallthru
      _
    // Predicated region
    $region38: #{tpu_custom_call.1} parent=1 // pred_check
      _
    $region39: #{tpu_custom_call.1} parent=1 // pred_check_branch
      %58 = sbr.rel (0) target = $region41
    $region40: #{tpu_custom_call.1} parent=1 // pred_region
      %s60 = ssub.s32 4096, 4096
      %61 = vsyncadd [#allocation6], %s60
      %s62 = sshll.u32 [#allocation7], 4
      %s63 = int_to_ptr.vmem [resolvable:$true] %s62
      %68 = dma.hbm_to_vmem [thread:$0]  %s9, 4096, %s63, [#allocation6], 128, 128, 8
    $region41: #{tpu_custom_call.1} parent=1 // pred_fallthru
      _
    // Predicated region
    $region42: #{tpu_custom_call.1} parent=1 // pred_check
      _
    $region43: #{tpu_custom_call.1} parent=1 // pred_check_branch
      %70 = sbr.rel (0) target = $region45
    $region44: #{tpu_custom_call.1} parent=1 // pred_region
      _
    $region45: #{tpu_custom_call.1} parent=1 // pred_fallthru
      _
    // Predicated region
    $region46: #{tpu_custom_call.1} parent=1 // pred_check
      _
    $region47: #{tpu_custom_call.1} parent=1 // pred_check_branch
      %72 = sbr.rel (0) target = $region49
    $region48: #{tpu_custom_call.1} parent=1 // pred_region
      %73 = dma.done [#allocation3], 2048
    $region49: #{tpu_custom_call.1} parent=1 // pred_fallthru
      _
    // Predicated region
    $region50: #{tpu_custom_call.1} parent=1 // pred_check
      _
    $region51: #{tpu_custom_call.1} parent=1 // pred_check_branch
      %75 = sbr.rel (0) target = $region53
    $region52: #{tpu_custom_call.1} parent=1 // pred_region
      %76 = dma.done [#allocation6], 8192
    $region53: #{tpu_custom_call.1} parent=1 // pred_fallthru
      _
    // Predicated region
    $region54: #{tpu_custom_call.1} parent=1 // pred_check
      _
    $region55: #{tpu_custom_call.1} parent=1 // pred_check_branch
      %78 = sbr.rel (0) target = $region57
    $region56: #{tpu_custom_call.1} parent=1 // pred_region
      %79 = dma.done [#allocation6], 4096
    $region57: #{tpu_custom_call.1} parent=1 // pred_fallthru
      _
    %v80 = vld [vmem:[%s0] sm:$0xff]
    %v81 = vld [vmem:[%s1] sm:$0x1]
    %83 = vset.pattern.permute.xlu0 0
    %84 = vperm.xlu0 %83, %v80
    %v85 = vpop.permute.xlu0 %84
    %v88 = vlaneseq
    %v89 = vshrl.u32 %v88, 7
    %v90 = vsub.s32 0, %v89
    %v91 = vrot.slane %v81, %v90
    %v93 = vmul.f32 %v85, %v91
    %v94 = vld [vmem:[%s2] sm:$0x1]
    %v96 = vlaneseq
    %v97 = vshrl.u32 %v96, 7
    %v98 = vsub.s32 0, %v97
    %v99 = vrot.slane %v94, %v98
    %v101 = vadd.f32 %v93, %v99
    %v102 = vld [vmem:[%s3] sm:$0x1]
    %v104 = vlaneseq
    %v105 = vshrl.u32 %v104, 7
    %v106 = vsub.s32 0, %v105
    %v107 = vrot.slane %v102, %v106
    %v109 = vmul.f32 %v85, %v107
    %v110 = vld [vmem:[%s4] sm:$0x1]
    %v112 = vlaneseq
    %v113 = vshrl.u32 %v112, 7
    %v114 = vsub.s32 0, %v113
    %v115 = vrot.slane %v110, %v114
    %v117 = vadd.f32 %v109, %v115
    %v118 = vand.u32 2147483647, %v101
    %vm119 = vcmp.le.f32.partialorder %v118, 0.7853982
    %vm120 = vcmp.lt.s32.totalorder %v101, 0
    %v121 = vand.u32 %v101, 2139095040
    %v122 = vshrl.u32 %v121, 23
    %v123 = vsub.s32 %v122, 127
    %v124 = vand.u32 2147483647, %v101
    %v125 = vand.u32 %v124, 8388607
    %v126 = vor.u32 %v125, 8388608
    %v127 = vsub.s32 0, %v126
    %v128 = vadd.s32 %v123, 1
    %vm129 = vcmp.gt.s32.totalorder %v128, 0
    %v130 = vsel %vm129, %v128, 0
    %v131 = vshrl.u32 %v130, 5
    %v132 = vand.u32 %v130, 31
    %v133 = vsub.s32 32, %v132
    %v134 = vshrl.u32 683565275, %v133
    %v135 = vshll.u32 683565275, %v132
    %v136 = vshrl.u32 2475754826, %v133
    %v137 = vor.u32 %v135, %v136
    %v138 = vshll.u32 2475754826, %v132
    %v139 = vshrl.u32 2131351028, %v133
    %v140 = vor.u32 %v138, %v139
    %v141 = vshll.u32 2131351028, %v132
    %v142 = vshrl.u32 2102212464, %v133
    %v143 = vor.u32 %v141, %v142
    %v144 = vshll.u32 2102212464, %v132
    %v145 = vshrl.u32 920167782, %v133
    %v146 = vor.u32 %v144, %v145
    %v147 = vshll.u32 920167782, %v132
    %v148 = vshrl.u32 1326507024, %v133
    %v149 = vor.u32 %v147, %v148
    %vm150 = vcmp.lt.s32.totalorder %v131, 1
    %vm151 = vcmp.lt.s32.totalorder %v131, 2
    %vm152 = vcmp.lt.s32.totalorder %v131, 3
    %vm153 = vcmp.lt.s32.totalorder %v131, 4
    %v154 = vsel %vm150, %v134, %v137
    %v155 = vsel %vm153, %v143, 2102212464
    %v156 = vsel %vm152, %v140, %v155
    %v157 = vsel %vm151, %v154, %v156
    %v158 = vsel %vm150, %v137, %v140
    %v159 = vsel %vm153, %v146, 920167782
    %v160 = vsel %vm152, %v143, %v159
    %v161 = vsel %vm151, %v158, %v160
    %v162 = vsel %vm150, %v140, %v143
    %v163 = vsel %vm153, %v149, 1326507024
    %v164 = vsel %vm152, %v146, %v163
    %v165 = vsel %vm151, %v162, %v164
    %v166 = vshll.u32 %v126, 8
    %v167 = vmul.u32.u64.compose %v166, %v165
    %v168 = vextract.low.u32 %v167
    %v169 = vextract.high.u32 %v167
    %v170 = vmul.u32.u64.compose %v166, %v161
    %v171 = vextract.low.u32 %v170
    %v172 = vextract.high.u32 %v170
    %v173 = vmul.u32 %v166, %v157
    %v174 = vadd.s32 %v169, %v171
    %vm175 = vc.u32 %v169, %v171
    %v176 = vadd.s32 %v172, 1
    %v177 = vsel %vm175, %v176, %v172
    %v178 = vadd.s32 %v173, %v177
    %v179 = vadd.s32 %v178, 536870912
    %v180 = vshrl.u32 %v179, 30
    %v181 = vshll.u32 %v180, 30
    %v182 = vsub.s32 %v178, %v181
    %vm183 = vcmp.lt.s32.totalorder %v182, 0
    %v184 = vsub.s32 0, %v182
    %v185 = vsel %vm183, %v184, %v182
    %v186 = vclz %v185
    %v187 = vsub.s32 %v186, 2
    %vm188 = vcmp.gt.s32.totalorder 0, %v187
    %v189 = vsel %vm188, 0, %v187
    %v190 = vsub.s32 32, %v189
    %v191 = vshll.u32 %v182, %v189
    %v192 = vshrl.u32 %v174, %v190
    %v193 = vor.u32 %v191, %v192
    %v194 = vsub.s32 4294967266, %v189
    %v195 = vadd.s32 %v194, 127
    %v196 = vshll.u32 %v195, 23
    %v197 = vor.u32 4788187, %v196
    %v198 = vand.u32 2147483647, %v197
    %v200 = vcvt.s32.f32 %v193
    %v201 = vmul.f32 %v200, %v198
    %v202 = vxor.u32 %v201, 2147483648
    %v203 = vsel %vm120, %v202, %v201
    %v204 = vsub.s32 4, %v180
    %v205 = vsel %vm120, %v204, %v180
    %v206 = vsel %vm119, %v101, %v203
    %v207 = vsel %vm119, 0, %v205
    %v208 = vcosq.f32.pop %v206
    %v209 = vsinq.f32.pop %v206
    %vm210 = vweird.f32 %v101
    %v211 = vadd.s32 %v207, 3
    %v212 = vand.u32 %v211, 3
    %vm213 = vcmp.lt.s32.totalorder %v212, 2
    %vm214 = vcmp.eq.s32.totalorder %v212, 0
    %v215 = vxor.u32 %v209, 2147483648
    %v216 = vsel %vm214, %v208, %v215
    %vm217 = vcmp.eq.s32.totalorder %v212, 2
    %v218 = vxor.u32 %v208, 2147483648
    %v219 = vsel %vm217, %v218, %v209
    %v220 = vsel %vm213, %v216, %v219
    %v221 = vsel %vm210, nan, %v220
    %v222 = vadd.f32 %v221, %v117
    %v223 = vmax.f32 %v222, 0.0
    %v224 = vld [vmem:[#allocation2] sm:$0xff]
    %v225 = vld [vmem:[#allocation2 + $0x8] sm:$0xff]
    %v226 = vld [vmem:[#allocation2 + $0x10] sm:$0xff]
    %v227 = vld [vmem:[#allocation2 + $0x18] sm:$0xff]
    %v228 = vld [vmem:[#allocation2 + $0x20] sm:$0xff]
    %v229 = vld [vmem:[#allocation2 + $0x28] sm:$0xff]
    %v230 = vld [vmem:[#allocation2 + $0x30] sm:$0xff]
    %v231 = vld [vmem:[#allocation2 + $0x38] sm:$0xff]
    %v232 = vld [vmem:[#allocation2 + $0x40] sm:$0xff]
    %v233 = vld [vmem:[#allocation2 + $0x48] sm:$0xff]
    %v234 = vld [vmem:[#allocation2 + $0x50] sm:$0xff]
    %v235 = vld [vmem:[#allocation2 + $0x58] sm:$0xff]
    %v236 = vld [vmem:[#allocation2 + $0x60] sm:$0xff]
    %v237 = vld [vmem:[#allocation2 + $0x68] sm:$0xff]
    %v238 = vld [vmem:[#allocation2 + $0x70] sm:$0xff]
    %v239 = vld [vmem:[#allocation2 + $0x78] sm:$0xff]
    %v240 = vld [vmem:[%s6] sm:$0x3]
    %v242 = vlaneseq
    %v243 = vshrl.u32 %v242, 7
    %v244 = vsub.s32 0, %v243
    %v245 = vrot.slane %v240, %v244
    %v246 = vlaneseq
    %v247 = vshrl.u32 %v246, 7
    %v248 = vsub.s32 1, %v247
    %v249 = vrot.slane %v240, %v248
    %vm252 = vcmask 523264
    %v254 = vsel %vm252, %v223, 0
    %256 = vmatprep.subr.mxu0 %v225
    %257 = vmatpush1.msra.mxu0 %v224
    %258 = vmatprep.subr.mxu0 %v227
    %259 = vmatpush1.msra.mxu0 %v226
    %260 = vmatprep.subr.mxu0 %v229
    %261 = vmatpush1.msra.mxu0 %v228
    %262 = vmatprep.subr.mxu0 %v231
    %263 = vmatpush1.msra.mxu0 %v230
    %264 = vmatprep.subr.mxu0 %v233
    %265 = vmatpush1.msra.mxu0 %v232
    %266 = vmatprep.subr.mxu0 %v235
    %267 = vmatpush1.msra.mxu0 %v234
    %268 = vmatprep.subr.mxu0 %v237
    %269 = vmatpush1.msra.mxu0 %v236
    %270 = vmatprep.subr.mxu0 %v239
    %271 = vmatpush1.msra.mxu0 %v238
    %272 = vmatprep.subr.mxu0 0.0
    %273 = vmatpush1.msra.mxu0 0.0
    %274 = vmatprep.subr.mxu0 0.0
    %275 = vmatpush1.msra.mxu0 0.0
    %276 = vmatprep.subr.mxu0 0.0
    %277 = vmatpush1.msra.mxu0 0.0
    %278 = vmatprep.subr.mxu0 0.0
    %279 = vmatpush1.msra.mxu0 0.0
    %280 = vmatprep.subr.mxu0 0.0
    %281 = vmatpush1.msra.mxu0 0.0
    %282 = vmatprep.subr.mxu0 0.0
    %283 = vmatpush1.msra.mxu0 0.0
    %284 = vmatprep.subr.mxu0 0.0
    %285 = vmatpush1.msra.mxu0 0.0
    %286 = vmatprep.subr.mxu0 0.0
    %287 = vmatpush1.msra.mxu0 0.0
    %288 = vmatprep.subr.mxu0 0.0
    %289 = vmatpush1.msra.mxu0 0.0
    %290 = vmatprep.subr.mxu0 0.0
    %291 = vmatpush1.msra.mxu0 0.0
    %292 = vmatprep.subr.mxu0 0.0
    %293 = vmatpush1.msra.mxu0 0.0
    %294 = vmatprep.subr.mxu0 0.0
    %295 = vmatpush1.msra.mxu0 0.0
    %296 = vmatprep.subr.mxu0 0.0
    %297 = vmatpush1.msra.mxu0 0.0
    %298 = vmatprep.subr.mxu0 0.0
    %299 = vmatpush1.msra.mxu0 0.0
    %300 = vmatprep.subr.mxu0 0.0
    %301 = vmatpush1.msra.mxu0 0.0
    %302 = vmatprep.subr.mxu0 0.0
    %303 = vmatpush1.msra.mxu0 0.0
    %304 = vmatprep.subr.mxu0 0.0
    %305 = vmatpush1.msra.mxu0 0.0
    %306 = vmatprep.subr.mxu0 0.0
    %307 = vmatpush1.msra.mxu0 0.0
    %308 = vmatprep.subr.mxu0 0.0
    %309 = vmatpush1.msra.mxu0 0.0
    %310 = vmatprep.subr.mxu0 0.0
    %311 = vmatpush1.msra.mxu0 0.0
    %312 = vmatprep.subr.mxu0 0.0
    %313 = vmatpush1.msra.mxu0 0.0
    %314 = vmatprep.subr.mxu0 0.0
    %315 = vmatpush1.msra.mxu0 0.0
    %316 = vmatprep.subr.mxu0 0.0
    %317 = vmatpush1.msra.mxu0 0.0
    %318 = vmatprep.subr.mxu0 0.0
    %319 = vmatpush1.msra.mxu0 0.0
    %320 = vmatprep.mubr.f32.mxu0 0.0
    %321 = vmatmul.mubr.f32.gmra.mrb[0].mxu0 %v254
    %v322 = vpop.f32.mrb[0].mxu0
    %v323 = vadd.f32 %v245, %v322
    %v324 = vpop.f32.mrb[0].mxu0
    %v325 = vadd.f32 %v249, %v324
    %326 = vdwg.mxu0
    %v327 = vand.u32 2147483647, %v323
    %vm328 = vcmp.le.f32.partialorder %v327, 0.7853982
    %vm329 = vcmp.lt.s32.totalorder %v323, 0
    %v330 = vand.u32 %v323, 2139095040
    %v331 = vshrl.u32 %v330, 23
    %v332 = vsub.s32 %v331, 127
    %v333 = vand.u32 2147483647, %v323
    %v334 = vand.u32 %v333, 8388607
    %v335 = vor.u32 %v334, 8388608
    %v336 = vsub.s32 0, %v335
    %v337 = vadd.s32 %v332, 1
    %vm338 = vcmp.gt.s32.totalorder %v337, 0
    %v339 = vsel %vm338, %v337, 0
    %v340 = vshrl.u32 %v339, 5
    %v341 = vand.u32 %v339, 31
    %v342 = vsub.s32 32, %v341
    %v343 = vshrl.u32 683565275, %v342
    %v344 = vshll.u32 683565275, %v341
    %v345 = vshrl.u32 2475754826, %v342
    %v346 = vor.u32 %v344, %v345
    %v347 = vshll.u32 2475754826, %v341
    %v348 = vshrl.u32 2131351028, %v342
    %v349 = vor.u32 %v347, %v348
    %v350 = vshll.u32 2131351028, %v341
    %v351 = vshrl.u32 2102212464, %v342
    %v352 = vor.u32 %v350, %v351
    %v353 = vshll.u32 2102212464, %v341
    %v354 = vshrl.u32 920167782, %v342
    %v355 = vor.u32 %v353, %v354
    %v356 = vshll.u32 920167782, %v341
    %v357 = vshrl.u32 1326507024, %v342
    %v358 = vor.u32 %v356, %v357
    %vm359 = vcmp.lt.s32.totalorder %v340, 1
    %vm360 = vcmp.lt.s32.totalorder %v340, 2
    %vm361 = vcmp.lt.s32.totalorder %v340, 3
    %vm362 = vcmp.lt.s32.totalorder %v340, 4
    %v363 = vsel %vm359, %v343, %v346
    %v364 = vsel %vm362, %v352, 2102212464
    %v365 = vsel %vm361, %v349, %v364
    %v366 = vsel %vm360, %v363, %v365
    %v367 = vsel %vm359, %v346, %v349
    %v368 = vsel %vm362, %v355, 920167782
    %v369 = vsel %vm361, %v352, %v368
    %v370 = vsel %vm360, %v367, %v369
    %v371 = vsel %vm359, %v349, %v352
    %v372 = vsel %vm362, %v358, 1326507024
    %v373 = vsel %vm361, %v355, %v372
    %v374 = vsel %vm360, %v371, %v373
    %v375 = vshll.u32 %v335, 8
    %v376 = vmul.u32.u64.compose %v375, %v374
    %v377 = vextract.low.u32 %v376
    %v378 = vextract.high.u32 %v376
    %v379 = vmul.u32.u64.compose %v375, %v370
    %v380 = vextract.low.u32 %v379
    %v381 = vextract.high.u32 %v379
    %v382 = vmul.u32 %v375, %v366
    %v383 = vadd.s32 %v378, %v380
    %vm384 = vc.u32 %v378, %v380
    %v385 = vadd.s32 %v381, 1
    %v386 = vsel %vm384, %v385, %v381
    %v387 = vadd.s32 %v382, %v386
    %v388 = vadd.s32 %v387, 536870912
    %v389 = vshrl.u32 %v388, 30
    %v390 = vshll.u32 %v389, 30
    %v391 = vsub.s32 %v387, %v390
    %vm392 = vcmp.lt.s32.totalorder %v391, 0
    %v393 = vsub.s32 0, %v391
    %v394 = vsel %vm392, %v393, %v391
    %v395 = vclz %v394
    %v396 = vsub.s32 %v395, 2
    %vm397 = vcmp.gt.s32.totalorder 0, %v396
    %v398 = vsel %vm397, 0, %v396
    %v399 = vsub.s32 32, %v398
    %v400 = vshll.u32 %v391, %v398
    %v401 = vshrl.u32 %v383, %v399
    %v402 = vor.u32 %v400, %v401
    %v403 = vsub.s32 4294967266, %v398
    %v404 = vadd.s32 %v403, 127
    %v405 = vshll.u32 %v404, 23
    %v406 = vor.u32 4788187, %v405
    %v407 = vand.u32 2147483647, %v406
    %v409 = vcvt.s32.f32 %v402
    %v410 = vmul.f32 %v409, %v407
    %v411 = vxor.u32 %v410, 2147483648
    %v412 = vsel %vm329, %v411, %v410
    %v413 = vsub.s32 4, %v389
    %v414 = vsel %vm329, %v413, %v389
    %v415 = vsel %vm328, %v323, %v412
    %v416 = vsel %vm328, 0, %v414
    %v417 = vcosq.f32.pop %v415
    %v418 = vsinq.f32.pop %v415
    %vm419 = vweird.f32 %v323
    %v420 = vadd.s32 %v416, 3
    %v421 = vand.u32 %v420, 3
    %vm422 = vcmp.lt.s32.totalorder %v421, 2
    %vm423 = vcmp.eq.s32.totalorder %v421, 0
    %v424 = vxor.u32 %v418, 2147483648
    %v425 = vsel %vm423, %v417, %v424
    %vm426 = vcmp.eq.s32.totalorder %v421, 2
    %v427 = vxor.u32 %v417, 2147483648
    %v428 = vsel %vm426, %v427, %v418
    %v429 = vsel %vm422, %v425, %v428
    %v430 = vsel %vm419, nan, %v429
    %v431 = vadd.f32 %v430, %v325
    %v432 = vmax.f32 %v431, 0.0
    %v433 = vld [vmem:[#allocation5] sm:$0xff]
    %v434 = vld [vmem:[#allocation5 + $0x8] sm:$0xff]
    %v435 = vld [vmem:[#allocation5 + $0x10] sm:$0xff]
    %v436 = vld [vmem:[#allocation5 + $0x18] sm:$0xff]
    %v437 = vld [vmem:[#allocation5 + $0x20] sm:$0xff]
    %v438 = vld [vmem:[#allocation5 + $0x28] sm:$0xff]
    %v439 = vld [vmem:[#allocation5 + $0x30] sm:$0xff]
    %v440 = vld [vmem:[#allocation5 + $0x38] sm:$0xff]
    %v441 = vld [vmem:[#allocation5 + $0x40] sm:$0xff]
    %v442 = vld [vmem:[#allocation5 + $0x48] sm:$0xff]
    %v443 = vld [vmem:[#allocation5 + $0x50] sm:$0xff]
    %v444 = vld [vmem:[#allocation5 + $0x58] sm:$0xff]
    %v445 = vld [vmem:[#allocation5 + $0x60] sm:$0xff]
    %v446 = vld [vmem:[#allocation5 + $0x68] sm:$0xff]
    %v447 = vld [vmem:[#allocation5 + $0x70] sm:$0xff]
    %v448 = vld [vmem:[#allocation5 + $0x78] sm:$0xff]
    %v449 = vld [vmem:[#allocation5 + $0x80] sm:$0xff]
    %v450 = vld [vmem:[#allocation5 + $0x88] sm:$0xff]
    %v451 = vld [vmem:[#allocation5 + $0x90] sm:$0xff]
    %v452 = vld [vmem:[#allocation5 + $0x98] sm:$0xff]
    %v453 = vld [vmem:[#allocation5 + $0xa0] sm:$0xff]
    %v454 = vld [vmem:[#allocation5 + $0xa8] sm:$0xff]
    %v455 = vld [vmem:[#allocation5 + $0xb0] sm:$0xff]
    %v456 = vld [vmem:[#allocation5 + $0xb8] sm:$0xff]
    %v457 = vld [vmem:[#allocation5 + $0xc0] sm:$0xff]
    %v458 = vld [vmem:[#allocation5 + $0xc8] sm:$0xff]
    %v459 = vld [vmem:[#allocation5 + $0xd0] sm:$0xff]
    %v460 = vld [vmem:[#allocation5 + $0xd8] sm:$0xff]
    %v461 = vld [vmem:[#allocation5 + $0xe0] sm:$0xff]
    %v462 = vld [vmem:[#allocation5 + $0xe8] sm:$0xff]
    %v463 = vld [vmem:[#allocation5 + $0xf0] sm:$0xff]
    %v464 = vld [vmem:[#allocation5 + $0xf8] sm:$0xff]
    %v465 = vld [vmem:[#allocation5 + $0x100] sm:$0xff]
    %v466 = vld [vmem:[#allocation5 + $0x108] sm:$0xff]
    %v467 = vld [vmem:[#allocation5 + $0x110] sm:$0xff]
    %v468 = vld [vmem:[#allocation5 + $0x118] sm:$0xff]
    %v469 = vld [vmem:[#allocation5 + $0x120] sm:$0xff]
    %v470 = vld [vmem:[#allocation5 + $0x128] sm:$0xff]
    %v471 = vld [vmem:[#allocation5 + $0x130] sm:$0xff]
    %v472 = vld [vmem:[#allocation5 + $0x138] sm:$0xff]
    %v473 = vld [vmem:[#allocation5 + $0x140] sm:$0xff]
    %v474 = vld [vmem:[#allocation5 + $0x148] sm:$0xff]
    %v475 = vld [vmem:[#allocation5 + $0x150] sm:$0xff]
    %v476 = vld [vmem:[#allocation5 + $0x158] sm:$0xff]
    %v477 = vld [vmem:[#allocation5 + $0x160] sm:$0xff]
    %v478 = vld [vmem:[#allocation5 + $0x168] sm:$0xff]
    %v479 = vld [vmem:[#allocation5 + $0x170] sm:$0xff]
    %v480 = vld [vmem:[#allocation5 + $0x178] sm:$0xff]
    %v481 = vld [vmem:[#allocation5 + $0x180] sm:$0xff]
    %v482 = vld [vmem:[#allocation5 + $0x188] sm:$0xff]
    %v483 = vld [vmem:[#allocation5 + $0x190] sm:$0xff]
    %v484 = vld [vmem:[#allocation5 + $0x198] sm:$0xff]
    %v485 = vld [vmem:[#allocation5 + $0x1a0] sm:$0xff]
    %v486 = vld [vmem:[#allocation5 + $0x1a8] sm:$0xff]
    %v487 = vld [vmem:[#allocation5 + $0x1b0] sm:$0xff]
    %v488 = vld [vmem:[#allocation5 + $0x1b8] sm:$0xff]
    %v489 = vld [vmem:[#allocation5 + $0x1c0] sm:$0xff]
    %v490 = vld [vmem:[#allocation5 + $0x1c8] sm:$0xff]
    %v491 = vld [vmem:[#allocation5 + $0x1d0] sm:$0xff]
    %v492 = vld [vmem:[#allocation5 + $0x1d8] sm:$0xff]
    %v493 = vld [vmem:[#allocation5 + $0x1e0] sm:$0xff]
    %v494 = vld [vmem:[#allocation5 + $0x1e8] sm:$0xff]
    %v495 = vld [vmem:[#allocation5 + $0x1f0] sm:$0xff]
    %v496 = vld [vmem:[#allocation5 + $0x1f8] sm:$0xff]
    %v497 = vld [vmem:[%s8] sm:$0xf]
    %v499 = vlaneseq
    %v500 = vshrl.u32 %v499, 7
    %v501 = vsub.s32 0, %v500
    %v502 = vrot.slane %v497, %v501
    %v503 = vlaneseq
    %v504 = vshrl.u32 %v503, 7
    %v505 = vsub.s32 1, %v504
    %v506 = vrot.slane %v497, %v505
    %v507 = vlaneseq
    %v508 = vshrl.u32 %v507, 7
    %v509 = vsub.s32 2, %v508
    %v510 = vrot.slane %v497, %v509
    %v511 = vlaneseq
    %v512 = vshrl.u32 %v511, 7
    %v513 = vsub.s32 3, %v512
    %v514 = vrot.slane %v497, %v513
    %519 = vmatprep.subr.mxu0 %v434
    %520 = vmatpush1.msra.mxu0 %v433
    %521 = vmatprep.subr.mxu0 %v438
    %522 = vmatpush1.msra.mxu0 %v437
    %523 = vmatprep.subr.mxu0 %v442
    %524 = vmatpush1.msra.mxu0 %v441
    %525 = vmatprep.subr.mxu0 %v446
    %526 = vmatpush1.msra.mxu0 %v445
    %527 = vmatprep.subr.mxu0 %v450
    %528 = vmatpush1.msra.mxu0 %v449
    %529 = vmatprep.subr.mxu0 %v454
    %530 = vmatpush1.msra.mxu0 %v453
    %531 = vmatprep.subr.mxu0 %v458
    %532 = vmatpush1.msra.mxu0 %v457
    %533 = vmatprep.subr.mxu0 %v462
    %534 = vmatpush1.msra.mxu0 %v461
    %535 = vmatprep.subr.mxu0 %v466
    %536 = vmatpush1.msra.mxu0 %v465
    %537 = vmatprep.subr.mxu0 %v470
    %538 = vmatpush1.msra.mxu0 %v469
    %539 = vmatprep.subr.mxu0 %v474
    %540 = vmatpush1.msra.mxu0 %v473
    %541 = vmatprep.subr.mxu0 %v478
    %542 = vmatpush1.msra.mxu0 %v477
    %543 = vmatprep.subr.mxu0 %v482
    %544 = vmatpush1.msra.mxu0 %v481
    %545 = vmatprep.subr.mxu0 %v486
    %546 = vmatpush1.msra.mxu0 %v485
    %547 = vmatprep.subr.mxu0 %v490
    %548 = vmatpush1.msra.mxu0 %v489
    %549 = vmatprep.subr.mxu0 %v494
    %550 = vmatpush1.msra.mxu0 %v493
    %551 = vmatprep.subr.mxu0 0.0
    %552 = vmatpush1.msra.mxu0 0.0
    %553 = vmatprep.subr.mxu0 0.0
    %554 = vmatpush1.msra.mxu0 0.0
    %555 = vmatprep.subr.mxu0 0.0
    %556 = vmatpush1.msra.mxu0 0.0
    %557 = vmatprep.subr.mxu0 0.0
    %558 = vmatpush1.msra.mxu0 0.0
    %559 = vmatprep.subr.mxu0 0.0
    %560 = vmatpush1.msra.mxu0 0.0
    %561 = vmatprep.subr.mxu0 0.0
    %562 = vmatpush1.msra.mxu0 0.0
    %563 = vmatprep.subr.mxu0 0.0
    %564 = vmatpush1.msra.mxu0 0.0
    %565 = vmatprep.subr.mxu0 0.0
    %566 = vmatpush1.msra.mxu0 0.0
    %567 = vmatprep.subr.mxu0 0.0
    %568 = vmatpush1.msra.mxu0 0.0
    %569 = vmatprep.subr.mxu0 0.0
    %570 = vmatpush1.msra.mxu0 0.0
    %571 = vmatprep.subr.mxu0 0.0
    %572 = vmatpush1.msra.mxu0 0.0
    %573 = vmatprep.subr.mxu0 0.0
    %574 = vmatpush1.msra.mxu0 0.0
    %575 = vmatprep.subr.mxu0 0.0
    %576 = vmatpush1.msra.mxu0 0.0
    %577 = vmatprep.subr.mxu0 0.0
    %578 = vmatpush1.msra.mxu0 0.0
    %579 = vmatprep.subr.mxu0 0.0
    %580 = vmatpush1.msra.mxu0 0.0
    %581 = vmatprep.subr.mxu0 0.0
    %582 = vmatpush1.msra.mxu0 0.0
    %583 = vmatprep.mubr.f32.mxu0 0.0
    %584 = vmatmul.mubr.f32.gmra.mrb[0].mxu0 %v432
    %v585 = vpop.f32.mrb[0].mxu0
    %v586 = vadd.f32 %v502, %v585
    %v587 = vpop.f32.mrb[0].mxu0
    %v588 = vadd.f32 %v506, %v587
    %589 = vdwg.mxu0
    %590 = vmatprep.subr.mxu0 %v436
    %591 = vmatpush1.msra.mxu0 %v435
    %592 = vmatprep.subr.mxu0 %v440
    %593 = vmatpush1.msra.mxu0 %v439
    %594 = vmatprep.subr.mxu0 %v444
    %595 = vmatpush1.msra.mxu0 %v443
    %596 = vmatprep.subr.mxu0 %v448
    %597 = vmatpush1.msra.mxu0 %v447
    %598 = vmatprep.subr.mxu0 %v452
    %599 = vmatpush1.msra.mxu0 %v451
    %600 = vmatprep.subr.mxu0 %v456
    %601 = vmatpush1.msra.mxu0 %v455
    %602 = vmatprep.subr.mxu0 %v460
    %603 = vmatpush1.msra.mxu0 %v459
    %604 = vmatprep.subr.mxu0 %v464
    %605 = vmatpush1.msra.mxu0 %v463
    %606 = vmatprep.subr.mxu0 %v468
    %607 = vmatpush1.msra.mxu0 %v467
    %608 = vmatprep.subr.mxu0 %v472
    %609 = vmatpush1.msra.mxu0 %v471
    %610 = vmatprep.subr.mxu0 %v476
    %611 = vmatpush1.msra.mxu0 %v475
    %612 = vmatprep.subr.mxu0 %v480
    %613 = vmatpush1.msra.mxu0 %v479
    %614 = vmatprep.subr.mxu0 %v484
    %615 = vmatpush1.msra.mxu0 %v483
    %616 = vmatprep.subr.mxu0 %v488
    %617 = vmatpush1.msra.mxu0 %v487
    %618 = vmatprep.subr.mxu0 %v492
    %619 = vmatpush1.msra.mxu0 %v491
    %620 = vmatprep.subr.mxu0 %v496
    %621 = vmatpush1.msra.mxu0 %v495
    %622 = vmatprep.subr.mxu0 0.0
    %623 = vmatpush1.msra.mxu0 0.0
    %624 = vmatprep.subr.mxu0 0.0
    %625 = vmatpush1.msra.mxu0 0.0
    %626 = vmatprep.subr.mxu0 0.0
    %627 = vmatpush1.msra.mxu0 0.0
    %628 = vmatprep.subr.mxu0 0.0
    %629 = vmatpush1.msra.mxu0 0.0
    %630 = vmatprep.subr.mxu0 0.0
    %631 = vmatpush1.msra.mxu0 0.0
    %632 = vmatprep.subr.mxu0 0.0
    %633 = vmatpush1.msra.mxu0 0.0
    %634 = vmatprep.subr.mxu0 0.0
    %635 = vmatpush1.msra.mxu0 0.0
    %636 = vmatprep.subr.mxu0 0.0
    %637 = vmatpush1.msra.mxu0 0.0
    %638 = vmatprep.subr.mxu0 0.0
    %639 = vmatpush1.msra.mxu0 0.0
    %640 = vmatprep.subr.mxu0 0.0
    %641 = vmatpush1.msra.mxu0 0.0
    %642 = vmatprep.subr.mxu0 0.0
    %643 = vmatpush1.msra.mxu0 0.0
    %644 = vmatprep.subr.mxu0 0.0
    %645 = vmatpush1.msra.mxu0 0.0
    %646 = vmatprep.subr.mxu0 0.0
    %647 = vmatpush1.msra.mxu0 0.0
    %648 = vmatprep.subr.mxu0 0.0
    %649 = vmatpush1.msra.mxu0 0.0
    %650 = vmatprep.subr.mxu0 0.0
    %651 = vmatpush1.msra.mxu0 0.0
    %652 = vmatprep.subr.mxu0 0.0
    %653 = vmatpush1.msra.mxu0 0.0
    %654 = vmatprep.mubr.f32.mxu0 0.0
    %655 = vmatmul.mubr.f32.gmra.mrb[0].mxu0 %v432
    %v656 = vpop.f32.mrb[0].mxu0
    %v657 = vadd.f32 %v510, %v656
    %v658 = vpop.f32.mrb[0].mxu0
    %v659 = vadd.f32 %v514, %v658
    %660 = vdwg.mxu0
    %v661 = vand.u32 2147483647, %v586
    %vm662 = vcmp.le.f32.partialorder %v661, 0.7853982
    %vm663 = vcmp.lt.s32.totalorder %v586, 0
    %v664 = vand.u32 %v586, 2139095040
    %v665 = vshrl.u32 %v664, 23
    %v666 = vsub.s32 %v665, 127
    %v667 = vand.u32 2147483647, %v586
    %v668 = vand.u32 %v667, 8388607
    %v669 = vor.u32 %v668, 8388608
    %v670 = vsub.s32 0, %v669
    %v671 = vadd.s32 %v666, 1
    %vm672 = vcmp.gt.s32.totalorder %v671, 0
    %v673 = vsel %vm672, %v671, 0
    %v674 = vshrl.u32 %v673, 5
    %v675 = vand.u32 %v673, 31
    %v676 = vsub.s32 32, %v675
    %v677 = vshrl.u32 683565275, %v676
    %v678 = vshll.u32 683565275, %v675
    %v679 = vshrl.u32 2475754826, %v676
    %v680 = vor.u32 %v678, %v679
    %v681 = vshll.u32 2475754826, %v675
    %v682 = vshrl.u32 2131351028, %v676
    %v683 = vor.u32 %v681, %v682
    %v684 = vshll.u32 2131351028, %v675
    %v685 = vshrl.u32 2102212464, %v676
    %v686 = vor.u32 %v684, %v685
    %v687 = vshll.u32 2102212464, %v675
    %v688 = vshrl.u32 920167782, %v676
    %v689 = vor.u32 %v687, %v688
    %v690 = vshll.u32 920167782, %v675
    %v691 = vshrl.u32 1326507024, %v676
    %v692 = vor.u32 %v690, %v691
    %vm693 = vcmp.lt.s32.totalorder %v674, 1
    %vm694 = vcmp.lt.s32.totalorder %v674, 2
    %vm695 = vcmp.lt.s32.totalorder %v674, 3
    %vm696 = vcmp.lt.s32.totalorder %v674, 4
    %v697 = vsel %vm693, %v677, %v680
    %v698 = vsel %vm696, %v686, 2102212464
    %v699 = vsel %vm695, %v683, %v698
    %v700 = vsel %vm694, %v697, %v699
    %v701 = vsel %vm693, %v680, %v683
    %v702 = vsel %vm696, %v689, 920167782
    %v703 = vsel %vm695, %v686, %v702
    %v704 = vsel %vm694, %v701, %v703
    %v705 = vsel %vm693, %v683, %v686
    %v706 = vsel %vm696, %v692, 1326507024
    %v707 = vsel %vm695, %v689, %v706
    %v708 = vsel %vm694, %v705, %v707
    %v709 = vshll.u32 %v669, 8
    %v710 = vmul.u32.u64.compose %v709, %v708
    %v711 = vextract.low.u32 %v710
    %v712 = vextract.high.u32 %v710
    %v713 = vmul.u32.u64.compose %v709, %v704
    %v714 = vextract.low.u32 %v713
    %v715 = vextract.high.u32 %v713
    %v716 = vmul.u32 %v709, %v700
    %v717 = vadd.s32 %v712, %v714
    %vm718 = vc.u32 %v712, %v714
    %v719 = vadd.s32 %v715, 1
    %v720 = vsel %vm718, %v719, %v715
    %v721 = vadd.s32 %v716, %v720
    %v722 = vadd.s32 %v721, 536870912
    %v723 = vshrl.u32 %v722, 30
    %v724 = vshll.u32 %v723, 30
    %v725 = vsub.s32 %v721, %v724
    %vm726 = vcmp.lt.s32.totalorder %v725, 0
    %v727 = vsub.s32 0, %v725
    %v728 = vsel %vm726, %v727, %v725
    %v729 = vclz %v728
    %v730 = vsub.s32 %v729, 2
    %vm731 = vcmp.gt.s32.totalorder 0, %v730
    %v732 = vsel %vm731, 0, %v730
    %v733 = vsub.s32 32, %v732
    %v734 = vshll.u32 %v725, %v732
    %v735 = vshrl.u32 %v717, %v733
    %v736 = vor.u32 %v734, %v735
    %v737 = vsub.s32 4294967266, %v732
    %v738 = vadd.s32 %v737, 127
    %v739 = vshll.u32 %v738, 23
    %v740 = vor.u32 4788187, %v739
    %v741 = vand.u32 2147483647, %v740
    %v743 = vcvt.s32.f32 %v736
    %v744 = vmul.f32 %v743, %v741
    %v745 = vxor.u32 %v744, 2147483648
    %v746 = vsel %vm663, %v745, %v744
    %v747 = vsub.s32 4, %v723
    %v748 = vsel %vm663, %v747, %v723
    %v749 = vsel %vm662, %v586, %v746
    %v750 = vsel %vm662, 0, %v748
    %v751 = vcosq.f32.pop %v749
    %v752 = vsinq.f32.pop %v749
    %vm753 = vweird.f32 %v586
    %v754 = vadd.s32 %v750, 3
    %v755 = vand.u32 %v754, 3
    %vm756 = vcmp.lt.s32.totalorder %v755, 2
    %vm757 = vcmp.eq.s32.totalorder %v755, 0
    %v758 = vxor.u32 %v752, 2147483648
    %v759 = vsel %vm757, %v751, %v758
    %vm760 = vcmp.eq.s32.totalorder %v755, 2
    %v761 = vxor.u32 %v751, 2147483648
    %v762 = vsel %vm760, %v761, %v752
    %v763 = vsel %vm756, %v759, %v762
    %v764 = vsel %vm753, nan, %v763
    %v765 = vand.u32 2147483647, %v588
    %vm766 = vcmp.le.f32.partialorder %v765, 0.7853982
    %vm767 = vcmp.lt.s32.totalorder %v588, 0
    %v768 = vand.u32 %v588, 2139095040
    %v769 = vshrl.u32 %v768, 23
    %v770 = vsub.s32 %v769, 127
    %v771 = vand.u32 2147483647, %v588
    %v772 = vand.u32 %v771, 8388607
    %v773 = vor.u32 %v772, 8388608
    %v774 = vsub.s32 0, %v773
    %v775 = vadd.s32 %v770, 1
    %vm776 = vcmp.gt.s32.totalorder %v775, 0
    %v777 = vsel %vm776, %v775, 0
    %v778 = vshrl.u32 %v777, 5
    %v779 = vand.u32 %v777, 31
    %v780 = vsub.s32 32, %v779
    %v781 = vshrl.u32 683565275, %v780
    %v782 = vshll.u32 683565275, %v779
    %v783 = vshrl.u32 2475754826, %v780
    %v784 = vor.u32 %v782, %v783
    %v785 = vshll.u32 2475754826, %v779
    %v786 = vshrl.u32 2131351028, %v780
    %v787 = vor.u32 %v785, %v786
    %v788 = vshll.u32 2131351028, %v779
    %v789 = vshrl.u32 2102212464, %v780
    %v790 = vor.u32 %v788, %v789
    %v791 = vshll.u32 2102212464, %v779
    %v792 = vshrl.u32 920167782, %v780
    %v793 = vor.u32 %v791, %v792
    %v794 = vshll.u32 920167782, %v779
    %v795 = vshrl.u32 1326507024, %v780
    %v796 = vor.u32 %v794, %v795
    %vm797 = vcmp.lt.s32.totalorder %v778, 1
    %vm798 = vcmp.lt.s32.totalorder %v778, 2
    %vm799 = vcmp.lt.s32.totalorder %v778, 3
    %vm800 = vcmp.lt.s32.totalorder %v778, 4
    %v801 = vsel %vm797, %v781, %v784
    %v802 = vsel %vm800, %v790, 2102212464
    %v803 = vsel %vm799, %v787, %v802
    %v804 = vsel %vm798, %v801, %v803
    %v805 = vsel %vm797, %v784, %v787
    %v806 = vsel %vm800, %v793, 920167782
    %v807 = vsel %vm799, %v790, %v806
    %v808 = vsel %vm798, %v805, %v807
    %v809 = vsel %vm797, %v787, %v790
    %v810 = vsel %vm800, %v796, 1326507024
    %v811 = vsel %vm799, %v793, %v810
    %v812 = vsel %vm798, %v809, %v811
    %v813 = vshll.u32 %v773, 8
    %v814 = vmul.u32.u64.compose %v813, %v812
    %v815 = vextract.low.u32 %v814
    %v816 = vextract.high.u32 %v814
    %v817 = vmul.u32.u64.compose %v813, %v808
    %v818 = vextract.low.u32 %v817
    %v819 = vextract.high.u32 %v817
    %v820 = vmul.u32 %v813, %v804
    %v821 = vadd.s32 %v816, %v818
    %vm822 = vc.u32 %v816, %v818
    %v823 = vadd.s32 %v819, 1
    %v824 = vsel %vm822, %v823, %v819
    %v825 = vadd.s32 %v820, %v824
    %v826 = vadd.s32 %v825, 536870912
    %v827 = vshrl.u32 %v826, 30
    %v828 = vshll.u32 %v827, 30
    %v829 = vsub.s32 %v825, %v828
    %vm830 = vcmp.lt.s32.totalorder %v829, 0
    %v831 = vsub.s32 0, %v829
    %v832 = vsel %vm830, %v831, %v829
    %v833 = vclz %v832
    %v834 = vsub.s32 %v833, 2
    %vm835 = vcmp.gt.s32.totalorder 0, %v834
    %v836 = vsel %vm835, 0, %v834
    %v837 = vsub.s32 32, %v836
    %v838 = vshll.u32 %v829, %v836
    %v839 = vshrl.u32 %v821, %v837
    %v840 = vor.u32 %v838, %v839
    %v841 = vsub.s32 4294967266, %v836
    %v842 = vadd.s32 %v841, 127
    %v843 = vshll.u32 %v842, 23
    %v844 = vor.u32 4788187, %v843
    %v845 = vand.u32 2147483647, %v844
    %v847 = vcvt.s32.f32 %v840
    %v848 = vmul.f32 %v847, %v845
    %v849 = vxor.u32 %v848, 2147483648
    %v850 = vsel %vm767, %v849, %v848
    %v851 = vsub.s32 4, %v827
    %v852 = vsel %vm767, %v851, %v827
    %v853 = vsel %vm766, %v588, %v850
    %v854 = vsel %vm766, 0, %v852
    %v855 = vcosq.f32.pop %v853
    %v856 = vsinq.f32.pop %v853
    %vm857 = vweird.f32 %v588
    %v858 = vadd.s32 %v854, 3
    %v859 = vand.u32 %v858, 3
    %vm860 = vcmp.lt.s32.totalorder %v859, 2
    %vm861 = vcmp.eq.s32.totalorder %v859, 0
    %v862 = vxor.u32 %v856, 2147483648
    %v863 = vsel %vm861, %v855, %v862
    %vm864 = vcmp.eq.s32.totalorder %v859, 2
    %v865 = vxor.u32 %v855, 2147483648
    %v866 = vsel %vm864, %v865, %v856
    %v867 = vsel %vm860, %v863, %v866
    %v868 = vsel %vm857, nan, %v867
    %v869 = vadd.f32 %v764, %v657
    %v870 = vadd.f32 %v868, %v659
    %v871 = vmax.f32 %v869, 0.0
    %v872 = vmax.f32 %v870, 0.0
    %v873 = vld [vmem:[#allocation7] sm:$0xff]
    %v874 = vld [vmem:[#allocation7 + $0x8] sm:$0xff]
    %v875 = vld [vmem:[#allocation7 + $0x10] sm:$0xff]
    %v876 = vld [vmem:[#allocation7 + $0x18] sm:$0xff]
    %v877 = vld [vmem:[#allocation7 + $0x20] sm:$0xff]
    %v878 = vld [vmem:[#allocation7 + $0x28] sm:$0xff]
    %v879 = vld [vmem:[#allocation7 + $0x30] sm:$0xff]
    %v880 = vld [vmem:[#allocation7 + $0x38] sm:$0xff]
    %v881 = vld [vmem:[#allocation7 + $0x40] sm:$0xff]
    %v882 = vld [vmem:[#allocation7 + $0x48] sm:$0xff]
    %v883 = vld [vmem:[#allocation7 + $0x50] sm:$0xff]
    %v884 = vld [vmem:[#allocation7 + $0x58] sm:$0xff]
    %v885 = vld [vmem:[#allocation7 + $0x60] sm:$0xff]
    %v886 = vld [vmem:[#allocation7 + $0x68] sm:$0xff]
    %v887 = vld [vmem:[#allocation7 + $0x70] sm:$0xff]
    %v888 = vld [vmem:[#allocation7 + $0x78] sm:$0xff]
    %v889 = vld [vmem:[#allocation7 + $0x80] sm:$0xff]
    %v890 = vld [vmem:[#allocation7 + $0x88] sm:$0xff]
    %v891 = vld [vmem:[#allocation7 + $0x90] sm:$0xff]
    %v892 = vld [vmem:[#allocation7 + $0x98] sm:$0xff]
    %v893 = vld [vmem:[#allocation7 + $0xa0] sm:$0xff]
    %v894 = vld [vmem:[#allocation7 + $0xa8] sm:$0xff]
    %v895 = vld [vmem:[#allocation7 + $0xb0] sm:$0xff]
    %v896 = vld [vmem:[#allocation7 + $0xb8] sm:$0xff]
    %v897 = vld [vmem:[#allocation7 + $0xc0] sm:$0xff]
    %v898 = vld [vmem:[#allocation7 + $0xc8] sm:$0xff]
    %v899 = vld [vmem:[#allocation7 + $0xd0] sm:$0xff]
    %v900 = vld [vmem:[#allocation7 + $0xd8] sm:$0xff]
    %v901 = vld [vmem:[#allocation7 + $0xe0] sm:$0xff]
    %v902 = vld [vmem:[#allocation7 + $0xe8] sm:$0xff]
    %v903 = vld [vmem:[#allocation7 + $0xf0] sm:$0xff]
    %v904 = vld [vmem:[#allocation7 + $0xf8] sm:$0xff]
    %v905 = vld [vmem:[%s10] sm:$0x1]
    %v907 = vlaneseq
    %v908 = vshrl.u32 %v907, 7
    %v909 = vsub.s32 0, %v908
    %v910 = vrot.slane %v905, %v909
    %912 = vmatprep.subr.mxu0 0.0
    %913 = vmatpush1.msra.mxu0 %v873
    %914 = vmatprep.subr.mxu0 0.0
    %915 = vmatpush1.msra.mxu0 %v874
    %916 = vmatprep.subr.mxu0 0.0
    %917 = vmatpush1.msra.mxu0 %v875
    %918 = vmatprep.subr.mxu0 0.0
    %919 = vmatpush1.msra.mxu0 %v876
    %920 = vmatprep.subr.mxu0 0.0
    %921 = vmatpush1.msra.mxu0 %v877
    %922 = vmatprep.subr.mxu0 0.0
    %923 = vmatpush1.msra.mxu0 %v878
    %924 = vmatprep.subr.mxu0 0.0
    %925 = vmatpush1.msra.mxu0 %v879
    %926 = vmatprep.subr.mxu0 0.0
    %927 = vmatpush1.msra.mxu0 %v880
    %928 = vmatprep.subr.mxu0 0.0
    %929 = vmatpush1.msra.mxu0 %v881
    %930 = vmatprep.subr.mxu0 0.0
    %931 = vmatpush1.msra.mxu0 %v882
    %932 = vmatprep.subr.mxu0 0.0
    %933 = vmatpush1.msra.mxu0 %v883
    %934 = vmatprep.subr.mxu0 0.0
    %935 = vmatpush1.msra.mxu0 %v884
    %936 = vmatprep.subr.mxu0 0.0
    %937 = vmatpush1.msra.mxu0 %v885
    %938 = vmatprep.subr.mxu0 0.0
    %939 = vmatpush1.msra.mxu0 %v886
    %940 = vmatprep.subr.mxu0 0.0
    %941 = vmatpush1.msra.mxu0 %v887
    %942 = vmatprep.subr.mxu0 0.0
    %943 = vmatpush1.msra.mxu0 %v888
    %944 = vmatprep.subr.mxu0 0.0
    %945 = vmatpush1.msra.mxu0 %v889
    %946 = vmatprep.subr.mxu0 0.0
    %947 = vmatpush1.msra.mxu0 %v890
    %948 = vmatprep.subr.mxu0 0.0
    %949 = vmatpush1.msra.mxu0 %v891
    %950 = vmatprep.subr.mxu0 0.0
    %951 = vmatpush1.msra.mxu0 %v892
    %952 = vmatprep.subr.mxu0 0.0
    %953 = vmatpush1.msra.mxu0 %v893
    %954 = vmatprep.subr.mxu0 0.0
    %955 = vmatpush1.msra.mxu0 %v894
    %956 = vmatprep.subr.mxu0 0.0
    %957 = vmatpush1.msra.mxu0 %v895
    %958 = vmatprep.subr.mxu0 0.0
    %959 = vmatpush1.msra.mxu0 %v896
    %960 = vmatprep.subr.mxu0 0.0
    %961 = vmatpush1.msra.mxu0 %v897
    %962 = vmatprep.subr.mxu0 0.0
    %963 = vmatpush1.msra.mxu0 %v898
    %964 = vmatprep.subr.mxu0 0.0
    %965 = vmatpush1.msra.mxu0 %v899
    %966 = vmatprep.subr.mxu0 0.0
    %967 = vmatpush1.msra.mxu0 %v900
    %968 = vmatprep.subr.mxu0 0.0
    %969 = vmatpush1.msra.mxu0 %v901
    %970 = vmatprep.subr.mxu0 0.0
    %971 = vmatpush1.msra.mxu0 %v902
    %972 = vmatprep.subr.mxu0 0.0
    %973 = vmatpush1.msra.mxu0 %v903
    %974 = vmatprep.subr.mxu0 0.0
    %975 = vmatpush1.msra.mxu0 %v904
    %976 = vmatprep.mubr.f32.mxu0 %v872
    %977 = vmatmul.mubr.f32.gmra.mrb[0].mxu0 %v871
    %v978 = vpop.f32.mrb[0].mxu0
    %v979 = vadd.f32 %v910, %v978
    %v980 = vpop.f32.mrb[0].mxu0
    %981 = vdwg.mxu0
    %982 = vst [vmem:[#allocation8] sm:$0xff] %v979
    // Predicated region
    $region58: #{tpu_custom_call.1} parent=1 // pred_check
      _
    $region59: #{tpu_custom_call.1} parent=1 // pred_check_branch
      %984 = sbr.rel (0) target = $region61
    $region60: #{tpu_custom_call.1} parent=1 // pred_region
      %s986 = ssub.s32 128, 128
      %987 = vsyncadd [#allocation4], %s986
      %s989 = sshll.u32 [#allocation8], 4
      %s990 = int_to_ptr.vmem [resolvable:$true] %s989
      %992 = dma.vmem_to_hbm [thread:$0]  %s990, 128, %s11, [#allocation4]
    $region61: #{tpu_custom_call.1} parent=1 // pred_fallthru
      _
    // Predicated region
    $region62: #{tpu_custom_call.1} parent=1 // pred_check
      _
    $region63: #{tpu_custom_call.1} parent=1 // pred_check_branch
      %994 = sbr.rel (0) target = $region65
    $region64: #{tpu_custom_call.1} parent=1 // pred_region
      %995 = dma.done [#allocation4], 128
    $region65: #{tpu_custom_call.1} parent=1 // pred_fallthru
      _
    %996 = vsyncpa [#allocation3], 1
    %997 = vsyncpa [#allocation6], 1
    %998 = vsyncpa [#allocation4], 1

</llo_original>
